<compile_context>
chip_gen: v7x
topology: tpu7x:2x2x1
jax: 0.10.0
libtpu: 0.0.40
codegen_flags: <defaults>
</compile_context>

<pallas_src>
from functools import partial

import jax
import jax.numpy as jnp
import numpy as np
from jax.experimental import pallas as pl
from jax.experimental.pallas import tpu as pltpu


# --------------------------------------------------------------------------- #
# Kernel: one bf16 MXU dot (f32 accumulation) + fused ReLU, lane-dense store.  #
# --------------------------------------------------------------------------- #
def _gemm_relu_kernel(x3_ref, w_ref, o_ref):
    # x3_ref: (TM, Kpad)  bf16  row-wise im2col rows (BN bias column already = 1.0)
    # w_ref:  (Kpad, Npad) bf16  banded conv weights with BN scale/bias folded in
    # o_ref:  (TM, Npad)  f32   output rows, (W*Cout) on lanes -> unmasked stores
    acc = jnp.dot(x3_ref[...], w_ref[...], preferred_element_type=jnp.float32)
    o_ref[...] = jnp.maximum(acc, 0.0).astype(o_ref.dtype)


def _round_up(x, m):
    return (x + m - 1) // m * m


def _num_m_blocks(M):
    """1 grid step on single-TensorCore chips (v5e/v6e); 2 steps (one per TC) when the
    chip exposes two TensorCores (v7x) and M splits into bf16-tile-aligned halves."""
    try:
        kind = jax.devices()[0].device_kind.lower()
    except Exception:  # pragma: no cover - defensive
        kind = ""
    if "v7" in kind and M % 32 == 0:
        return 2
    return 1


# --------------------------------------------------------------------------- #
# One-time weight-side preprocessing (hoisted out of the per-forward path).    #
# --------------------------------------------------------------------------- #
def fold_conv_bn(weight_oihw, gamma, beta, running_mean, running_var, H, W, eps=1e-5):
    """Build the banded GEMM weight with eval-mode BN folded in.

    Returns bigw of shape (Kpad, Npad) in bf16 where
      Kpad = round_up(3*(W+2)*Cin + 1, 128)   (the +1 row carries the BN bias)
      Npad = round_up(W*Cout, 128)
    """
    Cout, Cin, _, _ = weight_oihw.shape
    Wp = W + 2
    kdim = 3 * Wp * Cin          # contraction: 3 input rows x (W+2) cols x Cin
    ndim = W * Cout              # one output row: W pixels x Cout channels on lanes
    kpad = _round_up(kdim + 1, 128)
    npad = _round_up(ndim, 128)

    # Folded eval-mode BN (f32, before any bf16 cast).
    scale = gamma / jnp.sqrt(running_var + eps)
    bias = beta - running_mean * scale

    # Conv weight to HWIO with BN scale folded into the output-channel axis.
    w_hwio = jnp.transpose(weight_oihw, (2, 3, 1, 0)).astype(jnp.float32)
    w_hwio = w_hwio * scale[None, None, None, :]

    # Banded weight: BigW[(ky, w', ci), (w, co)] = W_hwio[ky, w'-w, ci, co]
    # if 0 <= w'-w <= 2 else 0.
    kx = jnp.arange(3)[:, None, None]
    wpi = jnp.arange(Wp)[None, :, None]
    wi = jnp.arange(W)[None, None, :]
    sel = (wpi == wi + kx).astype(jnp.float32)                     # (3, Wp, W)
    bigw = jnp.einsum("kpw,ykio->ypiwo", sel, w_hwio)              # (3,Wp,Cin,W,Cout)
    bigw = bigw.reshape(kdim, ndim)

    # BN bias goes into the first zero K-padding row (X3's matching column is 1.0).
    bias_row = jnp.tile(bias, W).reshape(1, ndim)
    bigw = jnp.concatenate([bigw, bias_row], axis=0)               # (kdim+1, ndim)
    bigw = jnp.pad(bigw, ((0, kpad - kdim - 1), (0, npad - ndim))).astype(jnp.bfloat16)
    return bigw


# --------------------------------------------------------------------------- #
# Per-forward path (jitted): im2col -> one pallas_call -> NCHW transpose.      #
# --------------------------------------------------------------------------- #
@partial(jax.jit, static_argnames=("cout", "m_blocks"))
def _conv_bn_act_forward(x_nchw, bigw, *, cout, m_blocks):
    N, Cin, H, W = x_nchw.shape
    kpad, npad = bigw.shape
    kdim = 3 * (W + 2) * Cin
    ndim = W * cout
    M = N * H

    # Row-wise im2col, flattened over (N, H): x3[m, ky*Wp*Cin + w'*Cin + ci].
    x_nhwc = jnp.transpose(x_nchw, (0, 2, 3, 1))
    x_pad = jnp.pad(x_nhwc, ((0, 0), (1, 1), (1, 1), (0, 0)))
    x_rows = x_pad.reshape(N, H + 2, (W + 2) * Cin)
    x3 = jnp.concatenate(
        [x_rows[:, 0:H], x_rows[:, 1:H + 1], x_rows[:, 2:H + 2]], axis=-1)
    x3 = x3.reshape(M, kdim)
    # Column kdim is the BN-bias column (multiplies the bias row of BigW).
    ones_col = jnp.ones((M, 1), x3.dtype)
    x3 = jnp.concatenate([x3, ones_col], axis=-1)
    x3 = jnp.pad(x3, ((0, 0), (0, kpad - kdim - 1))).astype(jnp.bfloat16)

    tm = M // m_blocks
    per_step = 2 * tm * kpad * 2 + 2 * tm * npad * 4 + 2 * kpad * npad * 2
    vmem_limit = int(min(max(4 * per_step, 4 << 20), 32 << 20))

    out = pl.pallas_call(
        _gemm_relu_kernel,
        out_shape=jax.ShapeDtypeStruct((M, npad), jnp.float32),
        grid_spec=pltpu.PrefetchScalarGridSpec(
            num_scalar_prefetch=0,
            grid=(m_blocks,),
            in_specs=[
                pl.BlockSpec((tm, kpad), lambda i: (i, 0)),
                pl.BlockSpec((kpad, npad), lambda i: (0, 0)),
            ],
            out_specs=pl.BlockSpec((tm, npad), lambda i: (i, 0)),
        ),
        compiler_params=pltpu.CompilerParams(
            dimension_semantics=("parallel",),
            vmem_limit_bytes=vmem_limit),
    )(x3, bigw)

    # Un-flatten the (W*Cout) lanes (free reshape) and return NCHW (one transpose
    # required by the PyTorch layout contract).
    out_nhwc = out[:, :ndim].reshape(N, H, W, cout)
    return jnp.transpose(out_nhwc, (0, 3, 1, 2))


def conv_bn_act(x_nchw, bigw, cout):
    """ConvBNAct forward. x_nchw: (N, Cin, H, W) f32 -> (N, Cout, H, W) f32."""
    M = x_nchw.shape[0] * x_nchw.shape[2]
    return _conv_bn_act_forward(x_nchw, bigw, cout=cout, m_blocks=_num_m_blocks(M))


# --------------------------------------------------------------------------- #
# Reference + test.                                                            #
# --------------------------------------------------------------------------- #
def _reference(x_nchw, weight_oihw, gamma, beta, mean, var, eps=1e-5):
    """Pure-JAX reference (bf16 conv operands to match the kernel's MXU precision,
    f32 accumulation, eval-mode BN + ReLU)."""
    y = jax.lax.conv_general_dilated(
        x_nchw.astype(jnp.bfloat16), weight_oihw.astype(jnp.bfloat16),
        window_strides=(1, 1), padding=((1, 1), (1, 1)),
        dimension_numbers=("NCHW", "OIHW", "NCHW"),
        preferred_element_type=jnp.float32)
    scale = gamma / jnp.sqrt(var + eps)
    bias = beta - mean * scale
    y = y * scale[None, :, None, None] + bias[None, :, None, None]
    return jnp.maximum(y, 0.0)


if __name__ == "__main__":
    key = jax.random.PRNGKey(0)
    k_x, k_w, k_g, k_b, k_m, k_v = jax.random.split(key, 6)

    N, Cin, Cout, H, W = 2, 4, 8, 16, 16

    x = jax.random.normal(k_x, (N, Cin, H, W), dtype=jnp.float32)
    # Conv2d weight shape (out_channels, in_channels, kH, kW), bias=False.
    weight = jax.random.normal(k_w, (Cout, Cin, 3, 3), dtype=jnp.float32) * 0.1
    # BatchNorm2d parameters / running stats (deterministic, eval mode).
    gamma = 1.0 + 0.1 * jax.random.normal(k_g, (Cout,), dtype=jnp.float32)
    beta = 0.1 * jax.random.normal(k_b, (Cout,), dtype=jnp.float32)
    running_mean = 0.1 * jax.random.normal(k_m, (Cout,), dtype=jnp.float32)
    running_var = jnp.abs(jax.random.normal(k_v, (Cout,), dtype=jnp.float32)) + 0.5

    # One-time weight-side preprocessing (hoisted out of the forward path).
    bigw = jax.block_until_ready(
        fold_conv_bn(weight, gamma, beta, running_mean, running_var, H, W))

    out = conv_bn_act(x, bigw, Cout)
    out = jax.block_until_ready(out)

    ref = _reference(x, weight, gamma, beta, running_mean, running_var)
    # bf16 MXU inputs + BN scale folded into bf16 weights -> loosened tolerance
    # (f32 accumulation kept).
    np.testing.assert_allclose(np.asarray(out), np.asarray(ref),
                               rtol=2e-2, atol=2e-2)

    print("KERNEL_OK")
</pallas_src>

<mosaic_0001>
module attributes {stable_mosaic.version = 11 : i64} {
  func.func @_gemm_relu_kernel(%arg0: i32, %arg1: memref<32x256xbf16, #tpu.memory_space<vmem>>, %arg2: memref<256x128xbf16, #tpu.memory_space<vmem>>, %arg3: memref<32x128xf32, #tpu.memory_space<vmem>>) attributes {dimension_semantics = [#tpu.dimension_semantics<parallel>], iteration_bounds = array<i64: 1>, scalar_prefetch = 0 : i64, scratch_operands = 0 : i64, tpu.core_type = #tpu.core_type<tc>, window_params = [{transform_indices = @transform_0, window_bounds = array<i64: 32, 256>}, {pipeline_mode = #tpu.pipeline_mode<synchronous>, transform_indices = @transform_1, window_bounds = array<i64: 256, 128>}, {transform_indices = @transform_2, window_bounds = array<i64: 32, 128>}]} {
    %c0 = arith.constant 0 : index
    %c0_0 = arith.constant 0 : index
    %0 = vector.load %arg1[%c0, %c0_0] : memref<32x256xbf16, #tpu.memory_space<vmem>>, vector<32x256xbf16>
    %c0_1 = arith.constant 0 : index
    %c0_2 = arith.constant 0 : index
    %1 = vector.load %arg2[%c0_1, %c0_2] : memref<256x128xbf16, #tpu.memory_space<vmem>>, vector<256x128xbf16>
    %cst = arith.constant dense<0.000000e+00> : vector<32x128xf32>
    %2 = tpu.matmul %0, %1, %cst {dimension_numbers = #tpu.dot_dimension_numbers<[1], [0], [0], [1], [0, 0, 1, 1], [], []>} : vector<32x256xbf16>, vector<256x128xbf16>, vector<32x128xf32> -> vector<32x128xf32>
    %cst_3 = arith.constant 0.000000e+00 : f32
    %3 = vector.broadcast %cst_3 : f32 to vector<32x128xf32>
    %4 = arith.maximumf %2, %3 : vector<32x128xf32>
    %c0_4 = arith.constant 0 : index
    %c0_5 = arith.constant 0 : index
    %5 = vector.load %arg3[%c0_4, %c0_5] : memref<32x128xf32, #tpu.memory_space<vmem>>, vector<32x128xf32>
    tpu.vector_store %arg3[%c0_4, %c0_5], %4 {strides = array<i32>} : memref<32x128xf32, #tpu.memory_space<vmem>>, vector<32x128xf32>,
    return
  }
  func.func @transform_0(%arg0: i32) -> (i32, i32) {
    %c0_i32 = arith.constant 0 : i32
    %c0_i32_0 = arith.constant 0 : i32
    return %arg0, %c0_i32 : i32, i32
  }
  func.func @transform_1(%arg0: i32) -> (i32, i32) {
    %c0_i32 = arith.constant 0 : i32
    %c0_i32_0 = arith.constant 0 : i32
    %c0_i32_1 = arith.constant 0 : i32
    return %c0_i32, %c0_i32_0 : i32, i32
  }
  func.func @transform_2(%arg0: i32) -> (i32, i32) {
    %c0_i32 = arith.constant 0 : i32
    %c0_i32_0 = arith.constant 0 : i32
    return %arg0, %c0_i32 : i32, i32
  }
}

</mosaic_0001>

<llo_original>
// kernel: _conv_bn_act_forward.1
$region0: #{_conv_bn_act_forward.1}
  #allocation0 [shape = 'u32[]', space=smem, size = 0x4, offset = 0x4, fixed_abs, tag = 'smem constant byte address 0x4 - core index']
  #allocation1 [shape = 'u32[144,128]{1,0:T(1,128)}', space=vmem, size = 0x12000, scoped, tag = 'internal scratch']
  %s0 = inlined_call_operand.vmem [shape: bf16[32,256], index: 0, kind: input, shape index: {}]
  %s1 = inlined_call_operand.vmem [shape: bf16[256,128], index: 1, kind: input, shape index: {}]
  %s2 = inlined_call_operand.vmem [shape: f32[32,128], index: 2, kind: output, shape index: {}]
  %s3 = sld [smem:[#allocation0]]
  $region18: #{_conv_bn_act_forward.1} parent=0
    _
  %s5 = ssub.s32 1, %s3
  %s6 = scalar_select 0, %s5, %s3
  // Predicated region
  $region2: #{_conv_bn_act_forward.1} parent=0 // pred_check
    _
  $region3: #{_conv_bn_act_forward.1} parent=0 // pred_check_branch
    %8 = sbr.rel (0) target = $region5
  $region4: #{_conv_bn_act_forward.1} parent=0 // pred_region
    _
  $region5: #{_conv_bn_act_forward.1} parent=0 // pred_fallthru
    _
  // Predicated region
  $region6: #{_conv_bn_act_forward.1} parent=0 // pred_check
    _
  $region7: #{_conv_bn_act_forward.1} parent=0 // pred_check_branch
    %10 = sbr.rel (0) target = $region9
  $region8: #{_conv_bn_act_forward.1} parent=0 // pred_region
    _
  $region9: #{_conv_bn_act_forward.1} parent=0 // pred_fallthru
    _
  %v12 = vld [vmem:[%s0] sm:$0xff]
  %v13 = vld [vmem:[%s0 + $0x8] sm:$0xff]
  %v14 = vld [vmem:[%s0 + $0x10] sm:$0xff]
  %v15 = vld [vmem:[%s0 + $0x18] sm:$0xff]
  %v16 = vld [vmem:[%s1] sm:$0xf]
  %v17 = vld [vmem:[%s1 + $0x4] sm:$0xf]
  %v18 = vld [vmem:[%s1 + $0x8] sm:$0xf]
  %v19 = vld [vmem:[%s1 + $0xc] sm:$0xf]
  %v20 = vld [vmem:[%s1 + $0x10] sm:$0xf]
  %v21 = vld [vmem:[%s1 + $0x14] sm:$0xf]
  %v22 = vld [vmem:[%s1 + $0x18] sm:$0xf]
  %v23 = vld [vmem:[%s1 + $0x1c] sm:$0xf]
  %v24 = vld [vmem:[%s1 + $0x20] sm:$0xf]
  %v25 = vld [vmem:[%s1 + $0x24] sm:$0xf]
  %v26 = vld [vmem:[%s1 + $0x28] sm:$0xf]
  %v27 = vld [vmem:[%s1 + $0x2c] sm:$0xf]
  %v28 = vld [vmem:[%s1 + $0x30] sm:$0xf]
  %v29 = vld [vmem:[%s1 + $0x34] sm:$0xf]
  %v30 = vld [vmem:[%s1 + $0x38] sm:$0xf]
  %v31 = vld [vmem:[%s1 + $0x3c] sm:$0xf]
  %v32 = vld [vmem:[%s1 + $0x40] sm:$0xf]
  %v33 = vld [vmem:[%s1 + $0x44] sm:$0xf]
  %v34 = vld [vmem:[%s1 + $0x48] sm:$0xf]
  %v35 = vld [vmem:[%s1 + $0x4c] sm:$0xf]
  %v36 = vld [vmem:[%s1 + $0x50] sm:$0xf]
  %v37 = vld [vmem:[%s1 + $0x54] sm:$0xf]
  %v38 = vld [vmem:[%s1 + $0x58] sm:$0xf]
  %v39 = vld [vmem:[%s1 + $0x5c] sm:$0xf]
  %v40 = vld [vmem:[%s1 + $0x60] sm:$0xf]
  %v41 = vld [vmem:[%s1 + $0x64] sm:$0xf]
  %v42 = vld [vmem:[%s1 + $0x68] sm:$0xf]
  %v43 = vld [vmem:[%s1 + $0x6c] sm:$0xf]
  %v44 = vld [vmem:[%s1 + $0x70] sm:$0xf]
  %v45 = vld [vmem:[%s1 + $0x74] sm:$0xf]
  %v46 = vld [vmem:[%s1 + $0x78] sm:$0xf]
  %v47 = vld [vmem:[%s1 + $0x7c] sm:$0xf]
  %v52 = vunpack.c.l.b16 %v12
  %v53 = vunpack.c.h.b16 %v12
  %v54 = vunpack.c.l.b16 %v13
  %v55 = vunpack.c.h.b16 %v13
  %v56 = vunpack.c.l.b16 %v14
  %v57 = vunpack.c.h.b16 %v14
  %v58 = vunpack.c.l.b16 %v15
  %v59 = vunpack.c.h.b16 %v15
  %v60 = vpack.c.b16 %v54, %v52
  %v61 = vpack.c.b16 %v55, %v53
  %v62 = vpack.c.b16 %v58, %v56
  %v63 = vpack.c.b16 %v59, %v57
  %v100 = vunpack.c.l.b16 %v16
  %v101 = vunpack.c.l.b16 %v17
  %v102 = vunpack.c.l.b16 %v18
  %v103 = vunpack.c.l.b16 %v19
  %v104 = vunpack.c.l.b16 %v20
  %v105 = vunpack.c.l.b16 %v21
  %v106 = vunpack.c.l.b16 %v22
  %v107 = vunpack.c.l.b16 %v23
  %v108 = vunpack.c.l.b16 %v24
  %v109 = vunpack.c.l.b16 %v25
  %v110 = vunpack.c.l.b16 %v26
  %v111 = vunpack.c.l.b16 %v27
  %v112 = vunpack.c.l.b16 %v28
  %v113 = vunpack.c.l.b16 %v29
  %v114 = vunpack.c.l.b16 %v30
  %v115 = vunpack.c.l.b16 %v31
  %v116 = vunpack.c.l.b16 %v32
  %v117 = vunpack.c.l.b16 %v33
  %v118 = vunpack.c.l.b16 %v34
  %v119 = vunpack.c.l.b16 %v35
  %v120 = vunpack.c.l.b16 %v36
  %v121 = vunpack.c.l.b16 %v37
  %v122 = vunpack.c.l.b16 %v38
  %v123 = vunpack.c.l.b16 %v39
  %v124 = vunpack.c.l.b16 %v40
  %v125 = vunpack.c.l.b16 %v41
  %v126 = vunpack.c.l.b16 %v42
  %v127 = vunpack.c.l.b16 %v43
  %v128 = vunpack.c.l.b16 %v44
  %v129 = vunpack.c.l.b16 %v45
  %v130 = vunpack.c.l.b16 %v46
  %v131 = vunpack.c.l.b16 %v47
  %v132 = vpack.c.b16 %v101, %v100
  %v133 = vpack.c.b16 %v103, %v102
  %v134 = vpack.c.b16 %v105, %v104
  %v135 = vpack.c.b16 %v107, %v106
  %v136 = vpack.c.b16 %v109, %v108
  %v137 = vpack.c.b16 %v111, %v110
  %v138 = vpack.c.b16 %v113, %v112
  %v139 = vpack.c.b16 %v115, %v114
  %v140 = vpack.c.b16 %v117, %v116
  %v141 = vpack.c.b16 %v119, %v118
  %v142 = vpack.c.b16 %v121, %v120
  %v143 = vpack.c.b16 %v123, %v122
  %v144 = vpack.c.b16 %v125, %v124
  %v145 = vpack.c.b16 %v127, %v126
  %v146 = vpack.c.b16 %v129, %v128
  %v147 = vpack.c.b16 %v131, %v130
  %164 = vmatprep.subr.bf16.mxu0 0
  %165 = vmatpush1.bf16.msra.mxu0 %v132
  %166 = vmatprep.subr.bf16.mxu0 0
  %167 = vmatpush1.bf16.msra.mxu0 %v133
  %168 = vmatprep.subr.bf16.mxu0 0
  %169 = vmatpush1.bf16.msra.mxu0 %v134
  %170 = vmatprep.subr.bf16.mxu0 0
  %171 = vmatpush1.bf16.msra.mxu0 %v135
  %172 = vmatprep.subr.bf16.mxu0 0
  %173 = vmatpush1.bf16.msra.mxu0 %v136
  %174 = vmatprep.subr.bf16.mxu0 0
  %175 = vmatpush1.bf16.msra.mxu0 %v137
  %176 = vmatprep.subr.bf16.mxu0 0
  %177 = vmatpush1.bf16.msra.mxu0 %v138
  %178 = vmatprep.subr.bf16.mxu0 0
  %179 = vmatpush1.bf16.msra.mxu0 %v139
  %180 = vmatprep.subr.bf16.mxu0 0
  %181 = vmatpush1.bf16.msra.mxu0 %v140
  %182 = vmatprep.subr.bf16.mxu0 0
  %183 = vmatpush1.bf16.msra.mxu0 %v141
  %184 = vmatprep.subr.bf16.mxu0 0
  %185 = vmatpush1.bf16.msra.mxu0 %v142
  %186 = vmatprep.subr.bf16.mxu0 0
  %187 = vmatpush1.bf16.msra.mxu0 %v143
  %188 = vmatprep.subr.bf16.mxu0 0
  %189 = vmatpush1.bf16.msra.mxu0 %v144
  %190 = vmatprep.subr.bf16.mxu0 0
  %191 = vmatpush1.bf16.msra.mxu0 %v145
  %192 = vmatprep.subr.bf16.mxu0 0
  %193 = vmatpush1.bf16.msra.mxu0 %v146
  %194 = vmatprep.subr.bf16.mxu0 0
  %195 = vmatpush1.bf16.msra.mxu0 %v147
  %196 = vmatprep.mubr.bf16.mxu0 %v61
  %197 = vmatmul.mubr.bf16.gmra.mrb[0].mxu0 %v60
  %v198 = vpop.f32.mrb[0].mxu0
  %v199 = vadd.f32 0.0, %v198
  %v200 = vpop.f32.mrb[0].mxu0
  %v201 = vpop.f32.mrb[0].mxu0
  %v202 = vadd.f32 0.0, %v201
  %v203 = vpop.f32.mrb[0].mxu0
  %204 = vmatprep.mubr.bf16.mxu0 %v63
  %205 = vmatmul.mubr.bf16.gmra.mrb[0].mxu0 %v62
  %v206 = vpop.f32.mrb[0].mxu0
  %v207 = vadd.f32 0.0, %v206
  %v208 = vpop.f32.mrb[0].mxu0
  %v209 = vpop.f32.mrb[0].mxu0
  %v210 = vadd.f32 0.0, %v209
  %v211 = vpop.f32.mrb[0].mxu0
  %212 = vdwg.mxu0
  %v213 = vmax.f32 %v199, 0.0
  %v214 = vmax.f32 %v202, 0.0
  %v215 = vmax.f32 %v207, 0.0
  %v216 = vmax.f32 %v210, 0.0
  %217 = vst [vmem:[%s2] sm:$0xff] %v213
  %218 = vst [vmem:[%s2 + $0x8] sm:$0xff] %v214
  %219 = vst [vmem:[%s2 + $0x10] sm:$0xff] %v215
  %220 = vst [vmem:[%s2 + $0x18] sm:$0xff] %v216
  // Predicated region
  $region10: #{_conv_bn_act_forward.1} parent=0 // pred_check
    _
  $region11: #{_conv_bn_act_forward.1} parent=0 // pred_check_branch
    %222 = sbr.rel (0) target = $region13
  $region12: #{_conv_bn_act_forward.1} parent=0 // pred_region
    _
  $region13: #{_conv_bn_act_forward.1} parent=0 // pred_fallthru
    _
  // Predicated region
  $region14: #{_conv_bn_act_forward.1} parent=0 // pred_check
    _
  $region15: #{_conv_bn_act_forward.1} parent=0 // pred_check_branch
    %224 = sbr.rel (0) target = $region17
  $region16: #{_conv_bn_act_forward.1} parent=0 // pred_region
    _
  $region17: #{_conv_bn_act_forward.1} parent=0 // pred_fallthru
    _

</llo_original>
